<compile_context>
chip_gen: v6e
topology: v6e:2x2x1
jax: 0.10.0
libtpu: 0.0.40
codegen_flags: <defaults>
</compile_context>

<pallas_src>
import jax
import jax.numpy as jnp
from jax.experimental import pallas as pl
from jax.experimental.pallas import tpu as pltpu


def _round_up(x, m):
    return ((x + m - 1) // m) * m


def mlp_kernel(x_ref, w1_ref, b1_ref, w2_ref, b2_ref, o_ref, a_ref):
    # Hidden layer: (bm, 784)bf16 @ (784, 256)bf16 -> f32 acc, bias + ReLU in f32.
    h = jnp.dot(x_ref[...], w1_ref[...], preferred_element_type=jnp.float32)
    h = h + b1_ref[...]
    # Stage the activation in VMEM scratch as bf16 (feeds the MXU directly).
    a_ref[...] = jnp.maximum(h, 0.0).astype(a_ref.dtype)
    # Output layer: (bm, 256)bf16 @ (256, 128)bf16 -> f32 acc, bias in f32.
    out = jnp.dot(a_ref[...], w2_ref[...], preferred_element_type=jnp.float32)
    out = out + b2_ref[...]
    o_ref[...] = out.astype(o_ref.dtype)


def mlp_forward(x, w1, b1, w2, b2, *, bm=256):
    """x: (B, 784) f32; w1: (784, 256); b1: (256,); w2: (256, 10); b2: (10,)."""
    B, D_in = x.shape
    D_hid = w1.shape[1]
    D_out = w2.shape[1]

    # Lane-dense output: pad the 10-wide output to a multiple of 128 lanes.
    D_out_p = max(128, _round_up(D_out, 128))

    # Batch tiling: clamp the tile to the (8-aligned) batch, pad batch to a multiple.
    bm_eff = min(bm, _round_up(B, 8))
    B_pad = _round_up(B, bm_eff)

    # bf16 operands for the MXU; f32 accumulation happens inside the kernel.
    x_p = x
    if B_pad != B:
        x_p = jnp.pad(x, ((0, B_pad - B), (0, 0)))
    x_bf = x_p.astype(jnp.bfloat16)
    w1_bf = w1.astype(jnp.bfloat16)
    w2_bf = jnp.pad(w2, ((0, 0), (0, D_out_p - D_out))).astype(jnp.bfloat16)

    # Biases stay f32, as (1, N) rows that broadcast over the batch tile.
    b1_2d = b1.reshape(1, D_hid).astype(jnp.float32)
    b2_2d = jnp.pad(b2, (0, D_out_p - D_out)).reshape(1, D_out_p).astype(jnp.float32)

    grid = (B_pad // bm_eff,)
    out_padded = pl.pallas_call(
        mlp_kernel,
        out_shape=jax.ShapeDtypeStruct((B_pad, D_out_p), jnp.float32),
        grid_spec=pltpu.PrefetchScalarGridSpec(
            num_scalar_prefetch=0,
            grid=grid,
            in_specs=[
                pl.BlockSpec((bm_eff, D_in), lambda i: (i, 0)),      # x tile over batch
                pl.BlockSpec((D_in, D_hid), lambda i: (0, 0)),       # W1 resident
                pl.BlockSpec((1, D_hid), lambda i: (0, 0)),          # b1 resident
                pl.BlockSpec((D_hid, D_out_p), lambda i: (0, 0)),    # W2 resident (padded)
                pl.BlockSpec((1, D_out_p), lambda i: (0, 0)),        # b2 resident (padded)
            ],
            out_specs=pl.BlockSpec((bm_eff, D_out_p), lambda i: (i, 0)),
            scratch_shapes=[pltpu.VMEM((bm_eff, D_hid), jnp.bfloat16)],
        ),
        compiler_params=pltpu.CompilerParams(
            dimension_semantics=("parallel",),
        ),
    )(x_bf, w1_bf, b1_2d, w2_bf, b2_2d)

    return out_padded[:B, :D_out].astype(x.dtype)


def init_params(key):
    # Deterministic init mimicking nn.Linear default (uniform +/- 1/sqrt(fan_in)).
    k1, k2, k3, k4 = jax.random.split(key, 4)
    bound1 = 1.0 / jnp.sqrt(784.0)
    bound2 = 1.0 / jnp.sqrt(256.0)
    w1 = jax.random.uniform(k1, (784, 256), jnp.float32, -bound1, bound1)
    b1 = jax.random.uniform(k2, (256,), jnp.float32, -bound1, bound1)
    w2 = jax.random.uniform(k3, (256, 10), jnp.float32, -bound2, bound2)
    b2 = jax.random.uniform(k4, (10,), jnp.float32, -bound2, bound2)
    return w1, b1, w2, b2


if __name__ == "__main__":
    key = jax.random.PRNGKey(0)
    kx, kp = jax.random.split(key)
    # Small test: batch not a multiple of the tile, exercises padding + 2 grid steps.
    B = 50
    x = jax.random.normal(kx, (B, 784), jnp.float32)
    w1, b1, w2, b2 = init_params(kp)

    out = mlp_forward(x, w1, b1, w2, b2, bm=32)
    out = jax.block_until_ready(out)

    # Pure-JAX f32 reference (kernel uses bf16 operands + f32 accumulation).
    ref = jnp.maximum(x @ w1 + b1, 0.0) @ w2 + b2
    assert out.shape == (B, 10)
    assert jnp.allclose(out, ref, atol=3e-2, rtol=3e-2), float(
        jnp.max(jnp.abs(out - ref))
    )
    print("KERNEL_OK")
</pallas_src>

<mosaic_0001>
module attributes {stable_mosaic.version = 11 : i64} {
  func.func @mlp_kernel(%arg0: i32, %arg1: memref<32x784xbf16, #tpu.memory_space<vmem>>, %arg2: memref<784x256xbf16, #tpu.memory_space<vmem>>, %arg3: memref<1x256xf32, #tpu.memory_space<vmem>>, %arg4: memref<256x128xbf16, #tpu.memory_space<vmem>>, %arg5: memref<1x128xf32, #tpu.memory_space<vmem>>, %arg6: memref<32x128xf32, #tpu.memory_space<vmem>>, %arg7: memref<32x256xbf16, #tpu.memory_space<vmem>>) attributes {dimension_semantics = [#tpu.dimension_semantics<parallel>], iteration_bounds = array<i64: 2>, scalar_prefetch = 0 : i64, scratch_operands = 1 : i64, tpu.core_type = #tpu.core_type<tc>, window_params = [{transform_indices = @transform_0, window_bounds = array<i64: 32, 784>}, {pipeline_mode = #tpu.pipeline_mode<synchronous>, transform_indices = @transform_1, window_bounds = array<i64: 784, 256>}, {pipeline_mode = #tpu.pipeline_mode<synchronous>, transform_indices = @transform_2, window_bounds = array<i64: 1, 256>}, {pipeline_mode = #tpu.pipeline_mode<synchronous>, transform_indices = @transform_3, window_bounds = array<i64: 256, 128>}, {pipeline_mode = #tpu.pipeline_mode<synchronous>, transform_indices = @transform_4, window_bounds = array<i64: 1, 128>}, {transform_indices = @transform_5, window_bounds = array<i64: 32, 128>}]} {
    %c0 = arith.constant 0 : index
    %c0_0 = arith.constant 0 : index
    %0 = vector.load %arg1[%c0, %c0_0] : memref<32x784xbf16, #tpu.memory_space<vmem>>, vector<32x784xbf16>
    %c0_1 = arith.constant 0 : index
    %c0_2 = arith.constant 0 : index
    %1 = vector.load %arg2[%c0_1, %c0_2] : memref<784x256xbf16, #tpu.memory_space<vmem>>, vector<784x256xbf16>
    %cst = arith.constant dense<0.000000e+00> : vector<32x256xf32>
    %2 = tpu.matmul %0, %1, %cst {dimension_numbers = #tpu.dot_dimension_numbers<[1], [0], [0], [1], [0, 0, 1, 1], [], []>} : vector<32x784xbf16>, vector<784x256xbf16>, vector<32x256xf32> -> vector<32x256xf32>
    %c0_3 = arith.constant 0 : index
    %c0_4 = arith.constant 0 : index
    %3 = vector.load %arg3[%c0_3, %c0_4] : memref<1x256xf32, #tpu.memory_space<vmem>>, vector<1x256xf32>
    %4 = vector.broadcast %3 : vector<1x256xf32> to vector<32x256xf32>
    %5 = arith.addf %2, %4 : vector<32x256xf32>
    %cst_5 = arith.constant 0.000000e+00 : f32
    %6 = vector.broadcast %cst_5 : f32 to vector<32x256xf32>
    %7 = arith.maximumf %5, %6 : vector<32x256xf32>
    %8 = arith.truncf %7 : vector<32x256xf32> to vector<32x256xbf16>
    %c0_6 = arith.constant 0 : index
    %c0_7 = arith.constant 0 : index
    %9 = vector.load %arg7[%c0_6, %c0_7] : memref<32x256xbf16, #tpu.memory_space<vmem>>, vector<32x256xbf16>
    tpu.vector_store %arg7[%c0_6, %c0_7], %8 {strides = array<i32>} : memref<32x256xbf16, #tpu.memory_space<vmem>>, vector<32x256xbf16>,
    %c0_8 = arith.constant 0 : index
    %c0_9 = arith.constant 0 : index
    %10 = vector.load %arg7[%c0_8, %c0_9] : memref<32x256xbf16, #tpu.memory_space<vmem>>, vector<32x256xbf16>
    %c0_10 = arith.constant 0 : index
    %c0_11 = arith.constant 0 : index
    %11 = vector.load %arg4[%c0_10, %c0_11] : memref<256x128xbf16, #tpu.memory_space<vmem>>, vector<256x128xbf16>
    %cst_12 = arith.constant dense<0.000000e+00> : vector<32x128xf32>
    %12 = tpu.matmul %10, %11, %cst_12 {dimension_numbers = #tpu.dot_dimension_numbers<[1], [0], [0], [1], [0, 0, 1, 1], [], []>} : vector<32x256xbf16>, vector<256x128xbf16>, vector<32x128xf32> -> vector<32x128xf32>
    %c0_13 = arith.constant 0 : index
    %c0_14 = arith.constant 0 : index
    %13 = vector.load %arg5[%c0_13, %c0_14] : memref<1x128xf32, #tpu.memory_space<vmem>>, vector<1x128xf32>
    %14 = vector.broadcast %13 : vector<1x128xf32> to vector<32x128xf32>
    %15 = arith.addf %12, %14 : vector<32x128xf32>
    %c0_15 = arith.constant 0 : index
    %c0_16 = arith.constant 0 : index
    %16 = vector.load %arg6[%c0_15, %c0_16] : memref<32x128xf32, #tpu.memory_space<vmem>>, vector<32x128xf32>
    tpu.vector_store %arg6[%c0_15, %c0_16], %15 {strides = array<i32>} : memref<32x128xf32, #tpu.memory_space<vmem>>, vector<32x128xf32>,
    return
  }
  func.func @transform_0(%arg0: i32) -> (i32, i32) {
    %c0_i32 = arith.constant 0 : i32
    %c0_i32_0 = arith.constant 0 : i32
    return %arg0, %c0_i32 : i32, i32
  }
  func.func @transform_1(%arg0: i32) -> (i32, i32) {
    %c0_i32 = arith.constant 0 : i32
    %c0_i32_0 = arith.constant 0 : i32
    %c0_i32_1 = arith.constant 0 : i32
    return %c0_i32, %c0_i32_0 : i32, i32
  }
  func.func @transform_2(%arg0: i32) -> (i32, i32) {
    %c0_i32 = arith.constant 0 : i32
    %c0_i32_0 = arith.constant 0 : i32
    %c0_i32_1 = arith.constant 0 : i32
    return %c0_i32, %c0_i32_0 : i32, i32
  }
  func.func @transform_3(%arg0: i32) -> (i32, i32) {
    %c0_i32 = arith.constant 0 : i32
    %c0_i32_0 = arith.constant 0 : i32
    %c0_i32_1 = arith.constant 0 : i32
    return %c0_i32, %c0_i32_0 : i32, i32
  }
  func.func @transform_4(%arg0: i32) -> (i32, i32) {
    %c0_i32 = arith.constant 0 : i32
    %c0_i32_0 = arith.constant 0 : i32
    %c0_i32_1 = arith.constant 0 : i32
    return %c0_i32, %c0_i32_0 : i32, i32
  }
  func.func @transform_5(%arg0: i32) -> (i32, i32) {
    %c0_i32 = arith.constant 0 : i32
    %c0_i32_0 = arith.constant 0 : i32
    return %arg0, %c0_i32 : i32, i32
  }
}

</mosaic_0001>

<llo_original>
// kernel: tpu_custom_call.1
$region0: #{tpu_custom_call.1}
  #allocation0 [shape = 'u32[]', space=smem, size = 0x4, offset = 0x4, fixed_abs, tag = 'smem constant byte address 0x4 - core index']
  #allocation1 [shape = 'u32[144,128]{1,0:T(1,128)}', space=vmem, size = 0x12000, scoped, tag = 'internal scratch']
  #allocation2 [shape = 'bf16[32,256]{1,0:T(8,128)(2,1)}', space=vmem, size = 0x4000, scoped, tag = 'scratch operand']
  %s0 = inlined_call_operand.hbm [shape: bf16[64,784], index: 0, kind: input, shape index: {}]
  %s1 = inlined_call_operand.hbm [shape: bf16[784,256], index: 1, kind: input, shape index: {}]
  %s2 = inlined_call_operand.vmem [shape: f32[1,256], index: 2, kind: input, shape index: {}]
  %s3 = inlined_call_operand.hbm [shape: bf16[256,128], index: 3, kind: input, shape index: {}]
  %s4 = inlined_call_operand.vmem [shape: f32[1,128], index: 4, kind: input, shape index: {}]
  %s5 = inlined_call_operand.hbm [shape: f32[64,128], index: 5, kind: output, shape index: {}]
  %s6 = sld [smem:[#allocation0]]
  $region65: #{tpu_custom_call.1} parent=0
    _
  %s8 = ssub.s32 1, %s6
  %s9 = scalar_select 0, %s8, %s6
  $region1: #{tpu_custom_call.1} parent=0
    #allocation3 [shape = 'u8[114688]{0}', space=vmem, size = 0x1c000, scoped, tag = 'input window, operand 0']
    #allocation4 [shape = 's32[2]{0}', space=sflag, size = 0x8, scoped, tag = 'scoped memory for tpu_custom_call.1']
    #allocation5 [shape = 's32[2]{0}', space=sflag, size = 0x8, scoped, tag = 'scoped memory for tpu_custom_call.1']
    #allocation6 [shape = 'u8[401408]{0}', space=vmem, size = 0x62000, scoped, tag = 'input window, operand 1, single buffered']
    #allocation7 [shape = 's32[1]{0}', space=sflag, size = 0x4, scoped, tag = 'scoped memory for tpu_custom_call.1']
    #allocation8 [shape = 'u8[65536]{0}', space=vmem, size = 0x10000, scoped, tag = 'input window, operand 3, single buffered']
    #allocation9 [shape = 'u8[32768]{0}', space=vmem, size = 0x8000, scoped, tag = 'output window, operand 0']
    %10 = vsyncpa [#allocation4], 0
    %s11 = scalar_lea.sflag [#allocation4], 1
    %12 = vsyncpa %s11, 0
    %13 = vsyncpa [#allocation7], 0
    %14 = vsyncpa [#allocation5], 0
    %s15 = scalar_lea.sflag [#allocation5], 1
    %16 = vsyncpa %s15, 0
    loop: start=0, step=1, limit=4
    $region2: #{tpu_custom_call.1} parent=1 // loop_pre_header
      _
    $region3: #{tpu_custom_call.1} parent=1 // loop_header
      %s18 = sphi 0, %s22
      %p19 = scmp.ge.s32.totalorder %s18, 4
      %s28 = sphi 0, %s30
      %s31 = sphi 0, %s28
      %s32 = sphi 0, %s31
      %s48 = sphi 0, %s32
      %s52 = sphi 0, %s52
      %s54 = sphi 0, %s52
      %s55 = sphi 0, %s54
      %s69 = sphi 0, %s55
      %s73 = sphi 0, %s73
      %s75 = sphi 0, %s73
      %s76 = sphi 0, %s75
      %s90 = sphi 0, %s76
      %s94 = sphi 0, %s94
      %s96 = sphi 0, %s94
      %s97 = sphi 0, %s96
      %s111 = sphi 0, %s97
      %s115 = sphi 0, %s115
      %s117 = sphi 0, %s115
      %s118 = sphi 0, %s117
      %s132 = sphi 0, %s118
      %s138 = sphi 0, %s140
      %s141 = sphi 0, %s138
      %s142 = sphi 0, %s141
      %s158 = sphi 0, %s142
    $region4: #{tpu_custom_call.1} parent=1 // loop_header_branch
      %21 = sbr.rel (%p19) target = $region8
    $region5: #{tpu_custom_call.1} parent=1 // loop_body
      %s23 = ssub.s32 %s18, 1
      %s24 = ssub.s32 %s18, 2
      %s25 = sadd.s32 %s18, 1
      %s26 = ssub.s32 %s18, %s25
      %p27 = scmp.eq.s32.totalorder %s26, 0
      %s29 = sadd.s32 %s28, 1
      %s30 = scalar_select %p27, %s28, %s29
      %p33 = pneg %p27
      %p34 = scmp.eq.s32.totalorder %s18, 1
      %p35 = por %p33, %p34
      %p36 = scmp.ne.s32.totalorder %s28, %s31
      %p37 = scmp.eq.s32.totalorder %s18, 0
      %p38 = por %p36, %p37
      %p39 = scmp.ne.s32.totalorder %s28, %s31
      %p40 = scmp.eq.s32.totalorder %s23, 1
      %p41 = por %p39, %p40
      %p42 = scmp.ne.s32.totalorder %s31, %s32
      %p43 = scmp.eq.s32.totalorder %s23, 0
      %p44 = por %p42, %p43
      %p45 = scmp.ne.s32.totalorder %s31, %s32
      %p46 = scmp.eq.s32.totalorder %s24, 1
      %p47 = por %p45, %p46
      %p49 = scmp.ne.s32.totalorder %s32, %s48
      %p50 = scmp.eq.s32.totalorder %s24, 0
      %p51 = por %p49, %p50
      %s53 = sadd.s32 %s52, 1
      %p56 = scmp.eq.s32.totalorder %s18, 1
      %p57 = scmp.ne.s32.totalorder %s52, %s54
      %p58 = scmp.eq.s32.totalorder %s18, 0
      %p59 = por %p57, %p58
      %p60 = scmp.ne.s32.totalorder %s52, %s54
      %p61 = scmp.eq.s32.totalorder %s23, 1
      %p62 = por %p60, %p61
      %p63 = scmp.ne.s32.totalorder %s54, %s55
      %p64 = scmp.eq.s32.totalorder %s23, 0
      %p65 = por %p63, %p64
      %p66 = scmp.ne.s32.totalorder %s54, %s55
      %p67 = scmp.eq.s32.totalorder %s24, 1
      %p68 = por %p66, %p67
      %p70 = scmp.ne.s32.totalorder %s55, %s69
      %p71 = scmp.eq.s32.totalorder %s24, 0
      %p72 = por %p70, %p71
      %s74 = sadd.s32 %s73, 1
      %p77 = scmp.eq.s32.totalorder %s18, 1
      %p78 = scmp.ne.s32.totalorder %s73, %s75
      %p79 = scmp.eq.s32.totalorder %s18, 0
      %p80 = por %p78, %p79
      %p81 = scmp.ne.s32.totalorder %s73, %s75
      %p82 = scmp.eq.s32.totalorder %s23, 1
      %p83 = por %p81, %p82
      %p84 = scmp.ne.s32.totalorder %s75, %s76
      %p85 = scmp.eq.s32.totalorder %s23, 0
      %p86 = por %p84, %p85
      %p87 = scmp.ne.s32.totalorder %s75, %s76
      %p88 = scmp.eq.s32.totalorder %s24, 1
      %p89 = por %p87, %p88
      %p91 = scmp.ne.s32.totalorder %s76, %s90
      %p92 = scmp.eq.s32.totalorder %s24, 0
      %p93 = por %p91, %p92
      %s95 = sadd.s32 %s94, 1
      %p98 = scmp.eq.s32.totalorder %s18, 1
      %p99 = scmp.ne.s32.totalorder %s94, %s96
      %p100 = scmp.eq.s32.totalorder %s18, 0
      %p101 = por %p99, %p100
      %p102 = scmp.ne.s32.totalorder %s94, %s96
      %p103 = scmp.eq.s32.totalorder %s23, 1
      %p104 = por %p102, %p103
      %p105 = scmp.ne.s32.totalorder %s96, %s97
      %p106 = scmp.eq.s32.totalorder %s23, 0
      %p107 = por %p105, %p106
      %p108 = scmp.ne.s32.totalorder %s96, %s97
      %p109 = scmp.eq.s32.totalorder %s24, 1
      %p110 = por %p108, %p109
      %p112 = scmp.ne.s32.totalorder %s97, %s111
      %p113 = scmp.eq.s32.totalorder %s24, 0
      %p114 = por %p112, %p113
      %s116 = sadd.s32 %s115, 1
      %p119 = scmp.eq.s32.totalorder %s18, 1
      %p120 = scmp.ne.s32.totalorder %s115, %s117
      %p121 = scmp.eq.s32.totalorder %s18, 0
      %p122 = por %p120, %p121
      %p123 = scmp.ne.s32.totalorder %s115, %s117
      %p124 = scmp.eq.s32.totalorder %s23, 1
      %p125 = por %p123, %p124
      %p126 = scmp.ne.s32.totalorder %s117, %s118
      %p127 = scmp.eq.s32.totalorder %s23, 0
      %p128 = por %p126, %p127
      %p129 = scmp.ne.s32.totalorder %s117, %s118
      %p130 = scmp.eq.s32.totalorder %s24, 1
      %p131 = por %p129, %p130
      %p133 = scmp.ne.s32.totalorder %s118, %s132
      %p134 = scmp.eq.s32.totalorder %s24, 0
      %p135 = por %p133, %p134
      %s136 = ssub.s32 %s18, %s25
      %p137 = scmp.eq.s32.totalorder %s136, 0
      %s139 = sadd.s32 %s138, 1
      %s140 = scalar_select %p137, %s138, %s139
      %p143 = pneg %p137
      %p144 = scmp.eq.s32.totalorder %s18, 1
      %p145 = por %p143, %p144
      %p146 = scmp.ne.s32.totalorder %s138, %s141
      %p147 = scmp.eq.s32.totalorder %s18, 0
      %p148 = por %p146, %p147
      %p149 = scmp.ne.s32.totalorder %s138, %s141
      %p150 = scmp.eq.s32.totalorder %s23, 1
      %p151 = por %p149, %p150
      %p152 = scmp.ne.s32.totalorder %s141, %s142
      %p153 = scmp.eq.s32.totalorder %s23, 0
      %p154 = por %p152, %p153
      %p155 = scmp.ne.s32.totalorder %s141, %s142
      %p156 = scmp.eq.s32.totalorder %s24, 1
      %p157 = por %p155, %p156
      %p159 = scmp.ne.s32.totalorder %s142, %s158
      %p160 = scmp.eq.s32.totalorder %s24, 0
      %p161 = por %p159, %p160
      %p162 = scmp.le.s32.totalorder 1, %s18
      %p163 = scmp.lt.s32.totalorder %s18, 3
      %p164 = pnand %p162, %p163
      %p165 = pneg %p164
      // Predicated region
      $region9: #{tpu_custom_call.1} parent=5 // pred_check
        _
      $region10: #{tpu_custom_call.1} parent=5 // pred_check_branch
        %167 = sbr.rel (%p164) target = $region12
      $region11: #{tpu_custom_call.1} parent=5 // pred_region
        %s168 = ssub.s32 %s18, 1
        // Predicated region
        $region13: #{tpu_custom_call.1} parent=11 // pred_check
          %p169 = pneg %p65
        $region14: #{tpu_custom_call.1} parent=11 // pred_check_branch
          %171 = sbr.rel (%p169) target = $region16
        $region15: #{tpu_custom_call.1} parent=11 // pred_region
          %s173 = ssub.s32 12544, 12544
          %174 = vsyncadd [#allocation7], %s173
          %s175 = sshll.u32 [#allocation6], 4
          %s176 = int_to_ptr.vmem [resolvable:$true] %s175
          %181 = dma.hbm_to_vmem [thread:$0]  %s1, 12544, %s176, [#allocation7], 128, 128, 8
        $region16: #{tpu_custom_call.1} parent=11 // pred_fallthru
          _
        // Predicated region
        $region17: #{tpu_custom_call.1} parent=11 // pred_check
          %p182 = pneg %p86
        $region18: #{tpu_custom_call.1} parent=11 // pred_check_branch
          %184 = sbr.rel (%p182) target = $region20
        $region19: #{tpu_custom_call.1} parent=11 // pred_region
          _
        $region20: #{tpu_custom_call.1} parent=11 // pred_fallthru
          _
        // Predicated region
        $region21: #{tpu_custom_call.1} parent=11 // pred_check
          %p185 = pneg %p107
        $region22: #{tpu_custom_call.1} parent=11 // pred_check_branch
          %187 = sbr.rel (%p185) target = $region24
        $region23: #{tpu_custom_call.1} parent=11 // pred_region
          %s189 = ssub.s32 2048, 2048
          %190 = vsyncadd [#allocation7], %s189
          %s191 = sshll.u32 [#allocation8], 4
          %s192 = int_to_ptr.vmem [resolvable:$true] %s191
          %197 = dma.hbm_to_vmem [thread:$0]  %s3, 2048, %s192, [#allocation7], 64, 64, 4
        $region24: #{tpu_custom_call.1} parent=11 // pred_fallthru
          _
        // Predicated region
        $region25: #{tpu_custom_call.1} parent=11 // pred_check
          %p198 = pneg %p128
        $region26: #{tpu_custom_call.1} parent=11 // pred_check_branch
          %200 = sbr.rel (%p198) target = $region28
        $region27: #{tpu_custom_call.1} parent=11 // pred_region
          _
        $region28: #{tpu_custom_call.1} parent=11 // pred_fallthru
          _
      $region12: #{tpu_custom_call.1} parent=5 // pred_fallthru
        _
      %p201 = scmp.lt.s32.totalorder %s18, 2
      // Predicated region
      $region29: #{tpu_custom_call.1} parent=5 // pred_check
        %p202 = pneg %p201
      $region30: #{tpu_custom_call.1} parent=5 // pred_check_branch
        %204 = sbr.rel (%p202) target = $region32
      $region31: #{tpu_custom_call.1} parent=5 // pred_region
        // Predicated region
        $region33: #{tpu_custom_call.1} parent=31 // pred_check
          %p205 = pneg %p38
        $region34: #{tpu_custom_call.1} parent=31 // pred_check_branch
          %207 = sbr.rel (%p205) target = $region36
        $region35: #{tpu_custom_call.1} parent=31 // pred_region
          %s208 = sand.u32 %s28, 1
          %s209 = scalar_lea.sflag [#allocation4], %s208
          %s210 = sand.u32 %s28, 1
          %s211 = smul.addr %s210, 112
          %s212 = scalar_lea.vmem [#allocation3], %s211
          %s213 = smul.u32 4, %s18
          %s215 = ssub.s32 1792, 1792
          %216 = vsyncadd %s209, %s215
          %s217 = smul.addr %s213, 7
          %s218 = smul.addr %s217, 64
          %s219 = scalar_lea.hbm %s0, %s218
          %s220 = sshll.u32 %s212, 4
          %s221 = int_to_ptr.vmem [resolvable:$true] %s220
          %226 = dma.hbm_to_vmem [thread:$0]  %s219, 1792, %s221, %s209, 448, 448, 28
        $region36: #{tpu_custom_call.1} parent=31 // pred_fallthru
          _
      $region32: #{tpu_custom_call.1} parent=5 // pred_fallthru
        _
      %p227 = scmp.le.s32.totalorder 1, %s18
      %p228 = scmp.lt.s32.totalorder %s18, 3
      %p229 = pnand %p227, %p228
      %p230 = pneg %p229
      // Predicated region
      $region37: #{tpu_custom_call.1} parent=5 // pred_check
        _
      $region38: #{tpu_custom_call.1} parent=5 // pred_check_branch
        %232 = sbr.rel (%p229) target = $region40
      $region39: #{tpu_custom_call.1} parent=5 // pred_region
        %s233 = ssub.s32 %s18, 1
        %s234 = sand.u32 %s31, 1
        %s235 = scalar_lea.sflag [#allocation4], %s234
        %s236 = sand.u32 %s31, 1
        %s237 = smul.addr %s236, 112
        %s238 = scalar_lea.vmem [#allocation3], %s237
        // Predicated region
        $region41: #{tpu_custom_call.1} parent=39 // pred_check
          %p239 = pneg %p44
        $region42: #{tpu_custom_call.1} parent=39 // pred_check_branch
          %241 = sbr.rel (%p239) target = $region44
        $region43: #{tpu_custom_call.1} parent=39 // pred_region
          %242 = dma.done %s235, 1792
        $region44: #{tpu_custom_call.1} parent=39 // pred_fallthru
          _
        // Predicated region
        $region45: #{tpu_custom_call.1} parent=39 // pred_check
          %p243 = pneg %p65
        $region46: #{tpu_custom_call.1} parent=39 // pred_check_branch
          %245 = sbr.rel (%p243) target = $region48
        $region47: #{tpu_custom_call.1} parent=39 // pred_region
          %246 = dma.done [#allocation7], 12544
        $region48: #{tpu_custom_call.1} parent=39 // pred_fallthru
          _
        // Predicated region
        $region49: #{tpu_custom_call.1} parent=39 // pred_check
          %p247 = pneg %p107
        $region50: #{tpu_custom_call.1} parent=39 // pred_check_branch
          %249 = sbr.rel (%p247) target = $region52
        $region51: #{tpu_custom_call.1} parent=39 // pred_region
          %250 = dma.done [#allocation7], 2048
        $region52: #{tpu_custom_call.1} parent=39 // pred_fallthru
          _
        %s251 = sand.u32 %s31, 1
        %s252 = scalar_lea.sflag [#allocation4], %s251
        %s253 = sand.u32 %s31, 1
        %s254 = smul.addr %s253, 112
        %s255 = scalar_lea.vmem [#allocation3], %s254
        %p256 = pneg %p44
        %p257 = pneg %p41
        %p258 = pneg %p65
        %p259 = pneg %p62
        %p260 = pneg %p86
        %p261 = pneg %p83
        %p262 = pneg %p107
        %p263 = pneg %p104
        %p264 = pneg %p128
        %p265 = pneg %p125
        %p266 = pneg %p154
        %p267 = pneg %p151
        %s268 = sand.u32 %s141, 1
        %s269 = scalar_lea.sflag [#allocation5], %s268
        %s270 = sand.u32 %s141, 1
        %s271 = smul.addr %s270, 32
        %s272 = scalar_lea.vmem [#allocation9], %s271
        %s273 = smul.u32 4, %s23
        %s274 = smul.u32 4, %s23
        %v276 = vld [vmem:[%s238] sm:$0xff]
        %v277 = vld [vmem:[%s238 + $0x8] sm:$0xff]
        %v278 = vld [vmem:[%s238 + $0x10] sm:$0xff]
        %v279 = vld [vmem:[%s238 + $0x18] sm:$0xf]
        %v280 = vld [vmem:[%s238 + $0x1c] sm:$0xff]
        %v281 = vld [vmem:[%s238 + $0x24] sm:$0xff]
        %v282 = vld [vmem:[%s238 + $0x2c] sm:$0xff]
        %v283 = vld [vmem:[%s238 + $0x34] sm:$0xf]
        %v284 = vld [vmem:[%s238 + $0x38] sm:$0xff]
        %v285 = vld [vmem:[%s238 + $0x40] sm:$0xff]
        %v286 = vld [vmem:[%s238 + $0x48] sm:$0xff]
        %v287 = vld [vmem:[%s238 + $0x50] sm:$0xf]
        %v288 = vld [vmem:[%s238 + $0x54] sm:$0xff]
        %v289 = vld [vmem:[%s238 + $0x5c] sm:$0xff]
        %v290 = vld [vmem:[%s238 + $0x64] sm:$0xff]
        %v291 = vld [vmem:[%s238 + $0x6c] sm:$0xf]
        %v292 = vld [vmem:[#allocation6] sm:$0xff]
        %v293 = vld [vmem:[#allocation6 + $0x8] sm:$0xff]
        %v294 = vld [vmem:[#allocation6 + $0x10] sm:$0xff]
        %v295 = vld [vmem:[#allocation6 + $0x18] sm:$0xff]
        %v296 = vld [vmem:[#allocation6 + $0x20] sm:$0xff]
        %v297 = vld [vmem:[#allocation6 + $0x28] sm:$0xff]
        %v298 = vld [vmem:[#allocation6 + $0x30] sm:$0xff]
        %v299 = vld [vmem:[#allocation6 + $0x38] sm:$0xff]
        %v300 = vld [vmem:[#allocation6 + $0x40] sm:$0xff]
        %v301 = vld [vmem:[#allocation6 + $0x48] sm:$0xff]
        %v302 = vld [vmem:[#allocation6 + $0x50] sm:$0xff]
        %v303 = vld [vmem:[#allocation6 + $0x58] sm:$0xff]
        %v304 = vld [vmem:[#allocation6 + $0x60] sm:$0xff]
        %v305 = vld [vmem:[#allocation6 + $0x68] sm:$0xff]
        %v306 = vld [vmem:[#allocation6 + $0x70] sm:$0xff]
        %v307 = vld [vmem:[#allocation6 + $0x78] sm:$0xff]
        %v308 = vld [vmem:[#allocation6 + $0x80] sm:$0xff]
        %v309 = vld [vmem:[#allocation6 + $0x88] sm:$0xff]
        %v310 = vld [vmem:[#allocation6 + $0x90] sm:$0xff]
        %v311 = vld [vmem:[#allocation6 + $0x98] sm:$0xff]
        %v312 = vld [vmem:[#allocation6 + $0xa0] sm:$0xff]
        %v313 = vld [vmem:[#allocation6 + $0xa8] sm:$0xff]
        %v314 = vld [vmem:[#allocation6 + $0xb0] sm:$0xff]
        %v315 = vld [vmem:[#allocation6 + $0xb8] sm:$0xff]
        %v316 = vld [vmem:[#allocation6 + $0xc0] sm:$0xff]
        %v317 = vld [vmem:[#allocation6 + $0xc8] sm:$0xff]
        %v318 = vld [vmem:[#allocation6 + $0xd0] sm:$0xff]
        %v319 = vld [vmem:[#allocation6 + $0xd8] sm:$0xff]
        %v320 = vld [vmem:[#allocation6 + $0xe0] sm:$0xff]
        %v321 = vld [vmem:[#allocation6 + $0xe8] sm:$0xff]
        %v322 = vld [vmem:[#allocation6 + $0xf0] sm:$0xff]
        %v323 = vld [vmem:[#allocation6 + $0xf8] sm:$0xff]
        %v324 = vld [vmem:[#allocation6 + $0x100] sm:$0xff]
        %v325 = vld [vmem:[#allocation6 + $0x108] sm:$0xff]
        %v326 = vld [vmem:[#allocation6 + $0x110] sm:$0xff]
        %v327 = vld [vmem:[#allocation6 + $0x118] sm:$0xff]
        %v328 = vld [vmem:[#allocation6 + $0x120] sm:$0xff]
        %v329 = vld [vmem:[#allocation6 + $0x128] sm:$0xff]
        %v330 = vld [vmem:[#allocation6 + $0x130] sm:$0xff]
        %v331 = vld [vmem:[#allocation6 + $0x138] sm:$0xff]
        %v332 = vld [vmem:[#allocation6 + $0x140] sm:$0xff]
        %v333 = vld [vmem:[#allocation6 + $0x148] sm:$0xff]
        %v334 = vld [vmem:[#allocation6 + $0x150] sm:$0xff]
        %v335 = vld [vmem:[#allocation6 + $0x158] sm:$0xff]
        %v336 = vld [vmem:[#allocation6 + $0x160] sm:$0xff]
        %v337 = vld [vmem:[#allocation6 + $0x168] sm:$0xff]
        %v338 = vld [vmem:[#allocation6 + $0x170] sm:$0xff]
        %v339 = vld [vmem:[#allocation6 + $0x178] sm:$0xff]
        %v340 = vld [vmem:[#allocation6 + $0x180] sm:$0xff]
        %v341 = vld [vmem:[#allocation6 + $0x188] sm:$0xff]
        %v342 = vld [vmem:[#allocation6 + $0x190] sm:$0xff]
        %v343 = vld [vmem:[#allocation6 + $0x198] sm:$0xff]
        %v344 = vld [vmem:[#allocation6 + $0x1a0] sm:$0xff]
        %v345 = vld [vmem:[#allocation6 + $0x1a8] sm:$0xff]
        %v346 = vld [vmem:[#allocation6 + $0x1b0] sm:$0xff]
        %v347 = vld [vmem:[#allocation6 + $0x1b8] sm:$0xff]
        %v348 = vld [vmem:[#allocation6 + $0x1c0] sm:$0xff]
        %v349 = vld [vmem:[#allocation6 + $0x1c8] sm:$0xff]
        %v350 = vld [vmem:[#allocation6 + $0x1d0] sm:$0xff]
        %v351 = vld [vmem:[#allocation6 + $0x1d8] sm:$0xff]
        %v352 = vld [vmem:[#allocation6 + $0x1e0] sm:$0xff]
        %v353 = vld [vmem:[#allocation6 + $0x1e8] sm:$0xff]
        %v354 = vld [vmem:[#allocation6 + $0x1f0] sm:$0xff]
        %v355 = vld [vmem:[#allocation6 + $0x1f8] sm:$0xff]
        %v356 = vld [vmem:[#allocation6 + $0x200] sm:$0xff]
        %v357 = vld [vmem:[#allocation6 + $0x208] sm:$0xff]
        %v358 = vld [vmem:[#allocation6 + $0x210] sm:$0xff]
        %v359 = vld [vmem:[#allocation6 + $0x218] sm:$0xff]
        %v360 = vld [vmem:[#allocation6 + $0x220] sm:$0xff]
        %v361 = vld [vmem:[#allocation6 + $0x228] sm:$0xff]
        %v362 = vld [vmem:[#allocation6 + $0x230] sm:$0xff]
        %v363 = vld [vmem:[#allocation6 + $0x238] sm:$0xff]
        %v364 = vld [vmem:[#allocation6 + $0x240] sm:$0xff]
        %v365 = vld [vmem:[#allocation6 + $0x248] sm:$0xff]
        %v366 = vld [vmem:[#allocation6 + $0x250] sm:$0xff]
        %v367 = vld [vmem:[#allocation6 + $0x258] sm:$0xff]
        %v368 = vld [vmem:[#allocation6 + $0x260] sm:$0xff]
        %v369 = vld [vmem:[#allocation6 + $0x268] sm:$0xff]
        %v370 = vld [vmem:[#allocation6 + $0x270] sm:$0xff]
        %v371 = vld [vmem:[#allocation6 + $0x278] sm:$0xff]
        %v372 = vld [vmem:[#allocation6 + $0x280] sm:$0xff]
        %v373 = vld [vmem:[#allocation6 + $0x288] sm:$0xff]
        %v374 = vld [vmem:[#allocation6 + $0x290] sm:$0xff]
        %v375 = vld [vmem:[#allocation6 + $0x298] sm:$0xff]
        %v376 = vld [vmem:[#allocation6 + $0x2a0] sm:$0xff]
        %v377 = vld [vmem:[#allocation6 + $0x2a8] sm:$0xff]
        %v378 = vld [vmem:[#allocation6 + $0x2b0] sm:$0xff]
        %v379 = vld [vmem:[#allocation6 + $0x2b8] sm:$0xff]
        %v380 = vld [vmem:[#allocation6 + $0x2c0] sm:$0xff]
        %v381 = vld [vmem:[#allocation6 + $0x2c8] sm:$0xff]
        %v382 = vld [vmem:[#allocation6 + $0x2d0] sm:$0xff]
        %v383 = vld [vmem:[#allocation6 + $0x2d8] sm:$0xff]
        %v384 = vld [vmem:[#allocation6 + $0x2e0] sm:$0xff]
        %v385 = vld [vmem:[#allocation6 + $0x2e8] sm:$0xff]
        %v386 = vld [vmem:[#allocation6 + $0x2f0] sm:$0xff]
        %v387 = vld [vmem:[#allocation6 + $0x2f8] sm:$0xff]
        %v388 = vld [vmem:[#allocation6 + $0x300] sm:$0xff]
        %v389 = vld [vmem:[#allocation6 + $0x308] sm:$0xff]
        %v390 = vld [vmem:[%s2] sm:$0x3]
        %v392 = vlaneseq
        %v393 = vshrl.u32 %v392, 7
        %v394 = vsub.s32 0, %v393
        %v395 = vrot.slane %v390, %v394
        %v396 = vlaneseq
        %v397 = vshrl.u32 %v396, 7
        %v398 = vsub.s32 1, %v397
        %v399 = vrot.slane %v390, %v398
        %v418 = vunpack.c.l.b16 %v276
        %v419 = vunpack.c.h.b16 %v276
        %v420 = vunpack.c.l.b16 %v277
        %v421 = vunpack.c.h.b16 %v277
        %v422 = vunpack.c.l.b16 %v278
        %v423 = vunpack.c.h.b16 %v278
        %v424 = vunpack.c.l.b16 %v279
        %v425 = vunpack.c.l.b16 %v280
        %v426 = vunpack.c.h.b16 %v280
        %v427 = vunpack.c.l.b16 %v281
        %v428 = vunpack.c.h.b16 %v281
        %v429 = vunpack.c.l.b16 %v282
        %v430 = vunpack.c.h.b16 %v282
        %v431 = vunpack.c.l.b16 %v283
        %v432 = vunpack.c.l.b16 %v284
        %v433 = vunpack.c.h.b16 %v284
        %v434 = vunpack.c.l.b16 %v285
        %v435 = vunpack.c.h.b16 %v285
        %v436 = vunpack.c.l.b16 %v286
        %v437 = vunpack.c.h.b16 %v286
        %v438 = vunpack.c.l.b16 %v287
        %v439 = vunpack.c.l.b16 %v288
        %v440 = vunpack.c.h.b16 %v288
        %v441 = vunpack.c.l.b16 %v289
        %v442 = vunpack.c.h.b16 %v289
        %v443 = vunpack.c.l.b16 %v290
        %v444 = vunpack.c.h.b16 %v290
        %v445 = vunpack.c.l.b16 %v291
        %v446 = vpack.c.b16 %v425, %v418
        %v447 = vpack.c.b16 %v426, %v419
        %v448 = vpack.c.b16 %v427, %v420
        %v449 = vpack.c.b16 %v428, %v421
        %v450 = vpack.c.b16 %v429, %v422
        %v451 = vpack.c.b16 %v430, %v423
        %v452 = vpack.c.b16 %v431, %v424
        %v453 = vpack.c.b16 %v439, %v432
        %v454 = vpack.c.b16 %v440, %v433
        %v455 = vpack.c.b16 %v441, %v434
        %v456 = vpack.c.b16 %v442, %v435
        %v457 = vpack.c.b16 %v443, %v436
        %v458 = vpack.c.b16 %v444, %v437
        %v459 = vpack.c.b16 %v445, %v438
        %v570 = vunpack.c.l.b16 %v292
        %v571 = vunpack.c.h.b16 %v292
        %v572 = vunpack.c.l.b16 %v293
        %v573 = vunpack.c.h.b16 %v293
        %v574 = vunpack.c.l.b16 %v294
        %v575 = vunpack.c.h.b16 %v294
        %v576 = vunpack.c.l.b16 %v295
        %v577 = vunpack.c.h.b16 %v295
        %v578 = vunpack.c.l.b16 %v296
        %v579 = vunpack.c.h.b16 %v296
        %v580 = vunpack.c.l.b16 %v297
        %v581 = vunpack.c.h.b16 %v297
        %v582 = vunpack.c.l.b16 %v298
        %v583 = vunpack.c.h.b16 %v298
        %v584 = vunpack.c.l.b16 %v299
        %v585 = vunpack.c.h.b16 %v299
        %v586 = vunpack.c.l.b16 %v300
        %v587 = vunpack.c.h.b16 %v300
        %v588 = vunpack.c.l.b16 %v301
        %v589 = vunpack.c.h.b16 %v301
        %v590 = vunpack.c.l.b16 %v302
        %v591 = vunpack.c.h.b16 %v302
        %v592 = vunpack.c.l.b16 %v303
        %v593 = vunpack.c.h.b16 %v303
        %v594 = vunpack.c.l.b16 %v304
        %v595 = vunpack.c.h.b16 %v304
        %v596 = vunpack.c.l.b16 %v305
        %v597 = vunpack.c.h.b16 %v305
        %v598 = vunpack.c.l.b16 %v306
        %v599 = vunpack.c.h.b16 %v306
        %v600 = vunpack.c.l.b16 %v307
        %v601 = vunpack.c.h.b16 %v307
        %v602 = vunpack.c.l.b16 %v308
        %v603 = vunpack.c.h.b16 %v308
        %v604 = vunpack.c.l.b16 %v309
        %v605 = vunpack.c.h.b16 %v309
        %v606 = vunpack.c.l.b16 %v310
        %v607 = vunpack.c.h.b16 %v310
        %v608 = vunpack.c.l.b16 %v311
        %v609 = vunpack.c.h.b16 %v311
        %v610 = vunpack.c.l.b16 %v312
        %v611 = vunpack.c.h.b16 %v312
        %v612 = vunpack.c.l.b16 %v313
        %v613 = vunpack.c.h.b16 %v313
        %v614 = vunpack.c.l.b16 %v314
        %v615 = vunpack.c.h.b16 %v314
        %v616 = vunpack.c.l.b16 %v315
        %v617 = vunpack.c.h.b16 %v315
        %v618 = vunpack.c.l.b16 %v316
        %v619 = vunpack.c.h.b16 %v316
        %v620 = vunpack.c.l.b16 %v317
        %v621 = vunpack.c.h.b16 %v317
        %v622 = vunpack.c.l.b16 %v318
        %v623 = vunpack.c.h.b16 %v318
        %v624 = vunpack.c.l.b16 %v319
        %v625 = vunpack.c.h.b16 %v319
        %v626 = vunpack.c.l.b16 %v320
        %v627 = vunpack.c.h.b16 %v320
        %v628 = vunpack.c.l.b16 %v321
        %v629 = vunpack.c.h.b16 %v321
        %v630 = vunpack.c.l.b16 %v322
        %v631 = vunpack.c.h.b16 %v322
        %v632 = vunpack.c.l.b16 %v323
        %v633 = vunpack.c.h.b16 %v323
        %v634 = vunpack.c.l.b16 %v324
        %v635 = vunpack.c.h.b16 %v324
        %v636 = vunpack.c.l.b16 %v325
        %v637 = vunpack.c.h.b16 %v325
        %v638 = vunpack.c.l.b16 %v326
        %v639 = vunpack.c.h.b16 %v326
        %v640 = vunpack.c.l.b16 %v327
        %v641 = vunpack.c.h.b16 %v327
        %v642 = vunpack.c.l.b16 %v328
        %v643 = vunpack.c.h.b16 %v328
        %v644 = vunpack.c.l.b16 %v329
        %v645 = vunpack.c.h.b16 %v329
        %v646 = vunpack.c.l.b16 %v330
        %v647 = vunpack.c.h.b16 %v330
        %v648 = vunpack.c.l.b16 %v331
        %v649 = vunpack.c.h.b16 %v331
        %v650 = vunpack.c.l.b16 %v332
        %v651 = vunpack.c.h.b16 %v332
        %v652 = vunpack.c.l.b16 %v333
        %v653 = vunpack.c.h.b16 %v333
        %v654 = vunpack.c.l.b16 %v334
        %v655 = vunpack.c.h.b16 %v334
        %v656 = vunpack.c.l.b16 %v335
        %v657 = vunpack.c.h.b16 %v335
        %v658 = vunpack.c.l.b16 %v336
        %v659 = vunpack.c.h.b16 %v336
        %v660 = vunpack.c.l.b16 %v337
        %v661 = vunpack.c.h.b16 %v337
        %v662 = vunpack.c.l.b16 %v338
        %v663 = vunpack.c.h.b16 %v338
        %v664 = vunpack.c.l.b16 %v339
        %v665 = vunpack.c.h.b16 %v339
        %v666 = vunpack.c.l.b16 %v340
        %v667 = vunpack.c.h.b16 %v340
        %v668 = vunpack.c.l.b16 %v341
        %v669 = vunpack.c.h.b16 %v341
        %v670 = vunpack.c.l.b16 %v342
        %v671 = vunpack.c.h.b16 %v342
        %v672 = vunpack.c.l.b16 %v343
        %v673 = vunpack.c.h.b16 %v343
        %v674 = vunpack.c.l.b16 %v344
        %v675 = vunpack.c.h.b16 %v344
        %v676 = vunpack.c.l.b16 %v345
        %v677 = vunpack.c.h.b16 %v345
        %v678 = vunpack.c.l.b16 %v346
        %v679 = vunpack.c.h.b16 %v346
        %v680 = vunpack.c.l.b16 %v347
        %v681 = vunpack.c.h.b16 %v347
        %v682 = vunpack.c.l.b16 %v348
        %v683 = vunpack.c.h.b16 %v348
        %v684 = vunpack.c.l.b16 %v349
        %v685 = vunpack.c.h.b16 %v349
        %v686 = vunpack.c.l.b16 %v350
        %v687 = vunpack.c.h.b16 %v350
        %v688 = vunpack.c.l.b16 %v351
        %v689 = vunpack.c.h.b16 %v351
        %v690 = vunpack.c.l.b16 %v352
        %v691 = vunpack.c.h.b16 %v352
        %v692 = vunpack.c.l.b16 %v353
        %v693 = vunpack.c.h.b16 %v353
        %v694 = vunpack.c.l.b16 %v354
        %v695 = vunpack.c.h.b16 %v354
        %v696 = vunpack.c.l.b16 %v355
        %v697 = vunpack.c.h.b16 %v355
        %v698 = vunpack.c.l.b16 %v356
        %v699 = vunpack.c.h.b16 %v356
        %v700 = vunpack.c.l.b16 %v357
        %v701 = vunpack.c.h.b16 %v357
        %v702 = vunpack.c.l.b16 %v358
        %v703 = vunpack.c.h.b16 %v358
        %v704 = vunpack.c.l.b16 %v359
        %v705 = vunpack.c.h.b16 %v359
        %v706 = vunpack.c.l.b16 %v360
        %v707 = vunpack.c.h.b16 %v360
        %v708 = vunpack.c.l.b16 %v361
        %v709 = vunpack.c.h.b16 %v361
        %v710 = vunpack.c.l.b16 %v362
        %v711 = vunpack.c.h.b16 %v362
        %v712 = vunpack.c.l.b16 %v363
        %v713 = vunpack.c.h.b16 %v363
        %v714 = vunpack.c.l.b16 %v364
        %v715 = vunpack.c.h.b16 %v364
        %v716 = vunpack.c.l.b16 %v365
        %v717 = vunpack.c.h.b16 %v365
        %v718 = vunpack.c.l.b16 %v366
        %v719 = vunpack.c.h.b16 %v366
        %v720 = vunpack.c.l.b16 %v367
        %v721 = vunpack.c.h.b16 %v367
        %v722 = vunpack.c.l.b16 %v368
        %v723 = vunpack.c.h.b16 %v368
        %v724 = vunpack.c.l.b16 %v369
        %v725 = vunpack.c.h.b16 %v369
        %v726 = vunpack.c.l.b16 %v370
        %v727 = vunpack.c.h.b16 %v370
        %v728 = vunpack.c.l.b16 %v371
        %v729 = vunpack.c.h.b16 %v371
        %v730 = vunpack.c.l.b16 %v372
        %v731 = vunpack.c.h.b16 %v372
        %v732 = vunpack.c.l.b16 %v373
        %v733 = vunpack.c.h.b16 %v373
        %v734 = vunpack.c.l.b16 %v374
        %v735 = vunpack.c.h.b16 %v374
        %v736 = vunpack.c.l.b16 %v375
        %v737 = vunpack.c.h.b16 %v375
        %v738 = vunpack.c.l.b16 %v376
        %v739 = vunpack.c.h.b16 %v376
        %v740 = vunpack.c.l.b16 %v377
        %v741 = vunpack.c.h.b16 %v377
        %v742 = vunpack.c.l.b16 %v378
        %v743 = vunpack.c.h.b16 %v378
        %v744 = vunpack.c.l.b16 %v379
        %v745 = vunpack.c.h.b16 %v379
        %v746 = vunpack.c.l.b16 %v380
        %v747 = vunpack.c.h.b16 %v380
        %v748 = vunpack.c.l.b16 %v381
        %v749 = vunpack.c.h.b16 %v381
        %v750 = vunpack.c.l.b16 %v382
        %v751 = vunpack.c.h.b16 %v382
        %v752 = vunpack.c.l.b16 %v383
        %v753 = vunpack.c.h.b16 %v383
        %v754 = vunpack.c.l.b16 %v384
        %v755 = vunpack.c.h.b16 %v384
        %v756 = vunpack.c.l.b16 %v385
        %v757 = vunpack.c.h.b16 %v385
        %v758 = vunpack.c.l.b16 %v386
        %v759 = vunpack.c.h.b16 %v386
        %v760 = vunpack.c.l.b16 %v387
        %v761 = vunpack.c.h.b16 %v387
        %v762 = vunpack.c.l.b16 %v388
        %v763 = vunpack.c.h.b16 %v388
        %v764 = vunpack.c.l.b16 %v389
        %v765 = vunpack.c.h.b16 %v389
        %v766 = vpack.c.b16 %v572, %v570
        %v767 = vpack.c.b16 %v573, %v571
        %v768 = vpack.c.b16 %v576, %v574
        %v769 = vpack.c.b16 %v577, %v575
        %v770 = vpack.c.b16 %v580, %v578
        %v771 = vpack.c.b16 %v581, %v579
        %v772 = vpack.c.b16 %v584, %v582
        %v773 = vpack.c.b16 %v585, %v583
        %v774 = vpack.c.b16 %v588, %v586
        %v775 = vpack.c.b16 %v589, %v587
        %v776 = vpack.c.b16 %v592, %v590
        %v777 = vpack.c.b16 %v593, %v591
        %v778 = vpack.c.b16 %v596, %v594
        %v779 = vpack.c.b16 %v597, %v595
        %v780 = vpack.c.b16 %v600, %v598
        %v781 = vpack.c.b16 %v601, %v599
        %v782 = vpack.c.b16 %v604, %v602
        %v783 = vpack.c.b16 %v605, %v603
        %v784 = vpack.c.b16 %v608, %v606
        %v785 = vpack.c.b16 %v609, %v607
        %v786 = vpack.c.b16 %v612, %v610
        %v787 = vpack.c.b16 %v613, %v611
        %v788 = vpack.c.b16 %v616, %v614
        %v789 = vpack.c.b16 %v617, %v615
        %v790 = vpack.c.b16 %v620, %v618
        %v791 = vpack.c.b16 %v621, %v619
        %v792 = vpack.c.b16 %v624, %v622
        %v793 = vpack.c.b16 %v625, %v623
        %v794 = vpack.c.b16 %v628, %v626
        %v795 = vpack.c.b16 %v629, %v627
        %v796 = vpack.c.b16 %v632, %v630
        %v797 = vpack.c.b16 %v633, %v631
        %v798 = vpack.c.b16 %v636, %v634
        %v799 = vpack.c.b16 %v637, %v635
        %v800 = vpack.c.b16 %v640, %v638
        %v801 = vpack.c.b16 %v641, %v639
        %v802 = vpack.c.b16 %v644, %v642
        %v803 = vpack.c.b16 %v645, %v643
        %v804 = vpack.c.b16 %v648, %v646
        %v805 = vpack.c.b16 %v649, %v647
        %v806 = vpack.c.b16 %v652, %v650
        %v807 = vpack.c.b16 %v653, %v651
        %v808 = vpack.c.b16 %v656, %v654
        %v809 = vpack.c.b16 %v657, %v655
        %v810 = vpack.c.b16 %v660, %v658
        %v811 = vpack.c.b16 %v661, %v659
        %v812 = vpack.c.b16 %v664, %v662
        %v813 = vpack.c.b16 %v665, %v663
        %v814 = vpack.c.b16 %v668, %v666
        %v815 = vpack.c.b16 %v669, %v667
        %v816 = vpack.c.b16 %v672, %v670
        %v817 = vpack.c.b16 %v673, %v671
        %v818 = vpack.c.b16 %v676, %v674
        %v819 = vpack.c.b16 %v677, %v675
        %v820 = vpack.c.b16 %v680, %v678
        %v821 = vpack.c.b16 %v681, %v679
        %v822 = vpack.c.b16 %v684, %v682
        %v823 = vpack.c.b16 %v685, %v683
        %v824 = vpack.c.b16 %v688, %v686
        %v825 = vpack.c.b16 %v689, %v687
        %v826 = vpack.c.b16 %v692, %v690
        %v827 = vpack.c.b16 %v693, %v691
        %v828 = vpack.c.b16 %v696, %v694
        %v829 = vpack.c.b16 %v697, %v695
        %v830 = vpack.c.b16 %v700, %v698
        %v831 = vpack.c.b16 %v701, %v699
        %v832 = vpack.c.b16 %v704, %v702
        %v833 = vpack.c.b16 %v705, %v703
        %v834 = vpack.c.b16 %v708, %v706
        %v835 = vpack.c.b16 %v709, %v707
        %v836 = vpack.c.b16 %v712, %v710
        %v837 = vpack.c.b16 %v713, %v711
        %v838 = vpack.c.b16 %v716, %v714
        %v839 = vpack.c.b16 %v717, %v715
        %v840 = vpack.c.b16 %v720, %v718
        %v841 = vpack.c.b16 %v721, %v719
        %v842 = vpack.c.b16 %v724, %v722
        %v843 = vpack.c.b16 %v725, %v723
        %v844 = vpack.c.b16 %v728, %v726
        %v845 = vpack.c.b16 %v729, %v727
        %v846 = vpack.c.b16 %v732, %v730
        %v847 = vpack.c.b16 %v733, %v731
        %v848 = vpack.c.b16 %v736, %v734
        %v849 = vpack.c.b16 %v737, %v735
        %v850 = vpack.c.b16 %v740, %v738
        %v851 = vpack.c.b16 %v741, %v739
        %v852 = vpack.c.b16 %v744, %v742
        %v853 = vpack.c.b16 %v745, %v743
        %v854 = vpack.c.b16 %v748, %v746
        %v855 = vpack.c.b16 %v749, %v747
        %v856 = vpack.c.b16 %v752, %v750
        %v857 = vpack.c.b16 %v753, %v751
        %v858 = vpack.c.b16 %v756, %v754
        %v859 = vpack.c.b16 %v757, %v755
        %v860 = vpack.c.b16 %v760, %v758
        %v861 = vpack.c.b16 %v761, %v759
        %v862 = vpack.c.b16 %v764, %v762
        %v863 = vpack.c.b16 %v765, %v763
        %vm962 = vcmask 130048
        %v964 = vsel %vm962, %v452, 0
        %v967 = vsel %vm962, %v459, 0
        %969 = vmatprep.subr.bf16.mxu0 %v781
        %970 = vmatpush1.bf16.msra.mxu0 %v780
        %971 = vmatprep.subr.bf16.mxu0 %v779
        %972 = vmatpush1.bf16.msra.mxu0 %v778
        %973 = vmatprep.subr.bf16.mxu0 %v777
        %974 = vmatpush1.bf16.msra.mxu0 %v776
        %975 = vmatprep.subr.bf16.mxu0 %v775
        %976 = vmatpush1.bf16.msra.mxu0 %v774
        %977 = vmatprep.subr.bf16.mxu0 %v773
        %978 = vmatpush1.bf16.msra.mxu0 %v772
        %979 = vmatprep.subr.bf16.mxu0 %v771
        %980 = vmatpush1.bf16.msra.mxu0 %v770
        %981 = vmatprep.subr.bf16.mxu0 %v769
        %982 = vmatpush1.bf16.msra.mxu0 %v768
        %983 = vmatprep.subr.bf16.mxu0 %v767
        %984 = vmatpush1.bf16.msra.mxu0 %v766
        %985 = vmatprep.subr.bf16.mxu0 %v797
        %986 = vmatpush2.bf16.msra.mxu0 %v796
        %987 = vmatprep.subr.bf16.mxu0 %v795
        %988 = vmatpush2.bf16.msra.mxu0 %v794
        %989 = vmatprep.subr.bf16.mxu0 %v793
        %990 = vmatpush2.bf16.msra.mxu0 %v792
        %991 = vmatprep.subr.bf16.mxu0 %v791
        %992 = vmatpush2.bf16.msra.mxu0 %v790
        %993 = vmatprep.subr.bf16.mxu0 %v789
        %994 = vmatpush2.bf16.msra.mxu0 %v788
        %995 = vmatprep.subr.bf16.mxu0 %v787
        %996 = vmatpush2.bf16.msra.mxu0 %v786
        %997 = vmatprep.subr.bf16.mxu0 %v785
        %998 = vmatpush2.bf16.msra.mxu0 %v784
        %999 = vmatprep.subr.bf16.mxu0 %v783
        %1000 = vmatpush2.bf16.msra.mxu0 %v782
        %1001 = vmatprep.mubr.bf16.mxu0 %v447
        %1002 = vmatmul.mubr.bf16.gmra.mxu0 %v446
        %v1003 = vpop.f32.mrf.mxu0
        %v1004 = vadd.f32 %v395, %v1003
        %v1005 = vpop.f32.mrf.mxu0
        %v1006 = vadd.f32 %v399, %v1005
        %v1007 = vpop.f32.mrf.mxu0
        %v1008 = vadd.f32 %v395, %v1007
        %v1009 = vpop.f32.mrf.mxu0
        %v1010 = vadd.f32 %v399, %v1009
        %1011 = vmatprep.mubr.bf16.mxu0 %v454
        %1012 = vmatmul.mubr.bf16.gmra.mxu0 %v453
        %v1013 = vpop.f32.mrf.mxu0
        %v1014 = vadd.f32 %v395, %v1013
        %v1015 = vpop.f32.mrf.mxu0
        %v1016 = vadd.f32 %v399, %v1015
        %v1017 = vpop.f32.mrf.mxu0
        %v1018 = vadd.f32 %v395, %v1017
        %v1019 = vpop.f32.mrf.mxu0
        %v1020 = vadd.f32 %v399, %v1019
        %1021 = vdwg.mxu0
        %1022 = vmatprep.subr.bf16.mxu0 %v813
        %1023 = vmatpush1.bf16.msra.mxu0 %v812
        %1024 = vmatprep.subr.bf16.mxu0 %v811
        %1025 = vmatpush1.bf16.msra.mxu0 %v810
        %1026 = vmatprep.subr.bf16.mxu0 %v809
        %1027 = vmatpush1.bf16.msra.mxu0 %v808
        %1028 = vmatprep.subr.bf16.mxu0 %v807
        %1029 = vmatpush1.bf16.msra.mxu0 %v806
        %1030 = vmatprep.subr.bf16.mxu0 %v805
        %1031 = vmatpush1.bf16.msra.mxu0 %v804
        %1032 = vmatprep.subr.bf16.mxu0 %v803
        %1033 = vmatpush1.bf16.msra.mxu0 %v802
        %1034 = vmatprep.subr.bf16.mxu0 %v801
        %1035 = vmatpush1.bf16.msra.mxu0 %v800
        %1036 = vmatprep.subr.bf16.mxu0 %v799
        %1037 = vmatpush1.bf16.msra.mxu0 %v798
        %1038 = vmatprep.subr.bf16.mxu0 %v829
        %1039 = vmatpush2.bf16.msra.mxu0 %v828
        %1040 = vmatprep.subr.bf16.mxu0 %v827
        %1041 = vmatpush2.bf16.msra.mxu0 %v826
        %1042 = vmatprep.subr.bf16.mxu0 %v825
        %1043 = vmatpush2.bf16.msra.mxu0 %v824
        %1044 = vmatprep.subr.bf16.mxu0 %v823
        %1045 = vmatpush2.bf16.msra.mxu0 %v822
        %1046 = vmatprep.subr.bf16.mxu0 %v821
        %1047 = vmatpush2.bf16.msra.mxu0 %v820
        %1048 = vmatprep.subr.bf16.mxu0 %v819
        %1049 = vmatpush2.bf16.msra.mxu0 %v818
        %1050 = vmatprep.subr.bf16.mxu0 %v817
        %1051 = vmatpush2.bf16.msra.mxu0 %v816
        %1052 = vmatprep.subr.bf16.mxu0 %v815
        %1053 = vmatpush2.bf16.msra.mxu0 %v814
        %1054 = vmatprep.mubr.bf16.mxu0 %v449
        %1055 = vmatmul.mubr.bf16.gmra.mxu0 %v448
        %v1056 = vpop.f32.mrf.mxu0
        %v1057 = vadd.f32 %v1004, %v1056
        %v1058 = vpop.f32.mrf.mxu0
        %v1059 = vadd.f32 %v1006, %v1058
        %v1060 = vpop.f32.mrf.mxu0
        %v1061 = vadd.f32 %v1008, %v1060
        %v1062 = vpop.f32.mrf.mxu0
        %v1063 = vadd.f32 %v1010, %v1062
        %1064 = vmatprep.mubr.bf16.mxu0 %v456
        %1065 = vmatmul.mubr.bf16.gmra.mxu0 %v455
        %v1066 = vpop.f32.mrf.mxu0
        %v1067 = vadd.f32 %v1014, %v1066
        %v1068 = vpop.f32.mrf.mxu0
        %v1069 = vadd.f32 %v1016, %v1068
        %v1070 = vpop.f32.mrf.mxu0
        %v1071 = vadd.f32 %v1018, %v1070
        %v1072 = vpop.f32.mrf.mxu0
        %v1073 = vadd.f32 %v1020, %v1072
        %1074 = vdwg.mxu0
        %1075 = vmatprep.subr.bf16.mxu0 %v845
        %1076 = vmatpush1.bf16.msra.mxu0 %v844
        %1077 = vmatprep.subr.bf16.mxu0 %v843
        %1078 = vmatpush1.bf16.msra.mxu0 %v842
        %1079 = vmatprep.subr.bf16.mxu0 %v841
        %1080 = vmatpush1.bf16.msra.mxu0 %v840
        %1081 = vmatprep.subr.bf16.mxu0 %v839
        %1082 = vmatpush1.bf16.msra.mxu0 %v838
        %1083 = vmatprep.subr.bf16.mxu0 %v837
        %1084 = vmatpush1.bf16.msra.mxu0 %v836
        %1085 = vmatprep.subr.bf16.mxu0 %v835
        %1086 = vmatpush1.bf16.msra.mxu0 %v834
        %1087 = vmatprep.subr.bf16.mxu0 %v833
        %1088 = vmatpush1.bf16.msra.mxu0 %v832
        %1089 = vmatprep.subr.bf16.mxu0 %v831
        %1090 = vmatpush1.bf16.msra.mxu0 %v830
        %1091 = vmatprep.subr.bf16.mxu0 %v861
        %1092 = vmatpush2.bf16.msra.mxu0 %v860
        %1093 = vmatprep.subr.bf16.mxu0 %v859
        %1094 = vmatpush2.bf16.msra.mxu0 %v858
        %1095 = vmatprep.subr.bf16.mxu0 %v857
        %1096 = vmatpush2.bf16.msra.mxu0 %v856
        %1097 = vmatprep.subr.bf16.mxu0 %v855
        %1098 = vmatpush2.bf16.msra.mxu0 %v854
        %1099 = vmatprep.subr.bf16.mxu0 %v853
        %1100 = vmatpush2.bf16.msra.mxu0 %v852
        %1101 = vmatprep.subr.bf16.mxu0 %v851
        %1102 = vmatpush2.bf16.msra.mxu0 %v850
        %1103 = vmatprep.subr.bf16.mxu0 %v849
        %1104 = vmatpush2.bf16.msra.mxu0 %v848
        %1105 = vmatprep.subr.bf16.mxu0 %v847
        %1106 = vmatpush2.bf16.msra.mxu0 %v846
        %1107 = vmatprep.mubr.bf16.mxu0 %v451
        %1108 = vmatmul.mubr.bf16.gmra.mxu0 %v450
        %v1109 = vpop.f32.mrf.mxu0
        %v1110 = vadd.f32 %v1057, %v1109
        %v1111 = vpop.f32.mrf.mxu0
        %v1112 = vadd.f32 %v1059, %v1111
        %v1113 = vpop.f32.mrf.mxu0
        %v1114 = vadd.f32 %v1061, %v1113
        %v1115 = vpop.f32.mrf.mxu0
        %v1116 = vadd.f32 %v1063, %v1115
        %1117 = vmatprep.mubr.bf16.mxu0 %v458
        %1118 = vmatmul.mubr.bf16.gmra.mxu0 %v457
        %v1119 = vpop.f32.mrf.mxu0
        %v1120 = vadd.f32 %v1067, %v1119
        %v1121 = vpop.f32.mrf.mxu0
        %v1122 = vadd.f32 %v1069, %v1121
        %v1123 = vpop.f32.mrf.mxu0
        %v1124 = vadd.f32 %v1071, %v1123
        %v1125 = vpop.f32.mrf.mxu0
        %v1126 = vadd.f32 %v1073, %v1125
        %1127 = vdwg.mxu0
        %1128 = vmatprep.subr.bf16.mxu0 0
        %1129 = vmatpush1.bf16.msra.mxu0 0
        %1130 = vmatprep.subr.bf16.mxu0 0
        %1131 = vmatpush1.bf16.msra.mxu0 0
        %1132 = vmatprep.subr.bf16.mxu0 0
        %1133 = vmatpush1.bf16.msra.mxu0 0
        %1134 = vmatprep.subr.bf16.mxu0 0
        %1135 = vmatpush1.bf16.msra.mxu0 0
        %1136 = vmatprep.subr.bf16.mxu0 0
        %1137 = vmatpush1.bf16.msra.mxu0 0
        %1138 = vmatprep.subr.bf16.mxu0 0
        %1139 = vmatpush1.bf16.msra.mxu0 0
        %1140 = vmatprep.subr.bf16.mxu0 0
        %1141 = vmatpush1.bf16.msra.mxu0 0
        %1142 = vmatprep.subr.bf16.mxu0 %v863
        %1143 = vmatpush1.bf16.msra.mxu0 %v862
        %1144 = vmatprep.subr.bf16.mxu0 0
        %1145 = vmatpush2.bf16.msra.mxu0 0
        %1146 = vmatprep.subr.bf16.mxu0 0
        %1147 = vmatpush2.bf16.msra.mxu0 0
        %1148 = vmatprep.subr.bf16.mxu0 0
        %1149 = vmatpush2.bf16.msra.mxu0 0
        %1150 = vmatprep.subr.bf16.mxu0 0
        %1151 = vmatpush2.bf16.msra.mxu0 0
        %1152 = vmatprep.subr.bf16.mxu0 0
        %1153 = vmatpush2.bf16.msra.mxu0 0
        %1154 = vmatprep.subr.bf16.mxu0 0
        %1155 = vmatpush2.bf16.msra.mxu0 0
        %1156 = vmatprep.subr.bf16.mxu0 0
        %1157 = vmatpush2.bf16.msra.mxu0 0
        %1158 = vmatprep.subr.bf16.mxu0 0
        %1159 = vmatpush2.bf16.msra.mxu0 0
        %1160 = vmatprep.mubr.bf16.mxu0 0
        %1161 = vmatmul.mubr.bf16.gmra.mxu0 %v964
        %v1162 = vpop.f32.mrf.mxu0
        %v1163 = vadd.f32 %v1110, %v1162
        %v1164 = vpop.f32.mrf.mxu0
        %v1165 = vadd.f32 %v1112, %v1164
        %v1166 = vpop.f32.mrf.mxu0
        %v1167 = vadd.f32 %v1114, %v1166
        %v1168 = vpop.f32.mrf.mxu0
        %v1169 = vadd.f32 %v1116, %v1168
        %1170 = vmatprep.mubr.bf16.mxu0 0
        %1171 = vmatmul.mubr.bf16.gmra.mxu0 %v967
        %v1172 = vpop.f32.mrf.mxu0
        %v1173 = vadd.f32 %v1120, %v1172
        %v1174 = vpop.f32.mrf.mxu0
        %v1175 = vadd.f32 %v1122, %v1174
        %v1176 = vpop.f32.mrf.mxu0
        %v1177 = vadd.f32 %v1124, %v1176
        %v1178 = vpop.f32.mrf.mxu0
        %v1179 = vadd.f32 %v1126, %v1178
        %1180 = vdwg.mxu0
        %v1181 = vmax.f32 %v1163, 0.0
        %v1182 = vmax.f32 %v1165, 0.0
        %v1183 = vmax.f32 %v1167, 0.0
        %v1184 = vmax.f32 %v1169, 0.0
        %v1185 = vmax.f32 %v1173, 0.0
        %v1186 = vmax.f32 %v1175, 0.0
        %v1187 = vmax.f32 %v1177, 0.0
        %v1188 = vmax.f32 %v1179, 0.0
        %v1189 = vpack.c.bf16 %v1183, %v1181
        %v1190 = vpack.c.bf16 %v1184, %v1182
        %v1191 = vpack.c.bf16 %v1187, %v1185
        %v1192 = vpack.c.bf16 %v1188, %v1186
        %v1197 = vunpack.c.l.b16 %v1189
        %v1198 = vunpack.c.l.b16 %v1190
        %v1199 = vunpack.c.h.b16 %v1189
        %v1200 = vunpack.c.h.b16 %v1190
        %v1201 = vunpack.c.l.b16 %v1191
        %v1202 = vunpack.c.l.b16 %v1192
        %v1203 = vunpack.c.h.b16 %v1191
        %v1204 = vunpack.c.h.b16 %v1192
        %v1205 = vpack.c.b16 %v1198, %v1197
        %v1206 = vpack.c.b16 %v1200, %v1199
        %v1207 = vpack.c.b16 %v1202, %v1201
        %v1208 = vpack.c.b16 %v1204, %v1203
        %1213 = vst [vmem:[#allocation2] sm:$0xff] %v1205
        %1214 = vst [vmem:[#allocation2 + $0x8] sm:$0xff] %v1206
        %1215 = vst [vmem:[#allocation2 + $0x10] sm:$0xff] %v1207
        %1216 = vst [vmem:[#allocation2 + $0x18] sm:$0xff] %v1208
        %v1217 = vld [vmem:[#allocation2] sm:$0xff]
        %v1218 = vld [vmem:[#allocation2 + $0x8] sm:$0xff]
        %v1219 = vld [vmem:[#allocation2 + $0x10] sm:$0xff]
        %v1220 = vld [vmem:[#allocation2 + $0x18] sm:$0xff]
        %v1221 = vld [vmem:[#allocation8] sm:$0xf]
        %v1222 = vld [vmem:[#allocation8 + $0x4] sm:$0xf]
        %v1223 = vld [vmem:[#allocation8 + $0x8] sm:$0xf]
        %v1224 = vld [vmem:[#allocation8 + $0xc] sm:$0xf]
        %v1225 = vld [vmem:[#allocation8 + $0x10] sm:$0xf]
        %v1226 = vld [vmem:[#allocation8 + $0x14] sm:$0xf]
        %v1227 = vld [vmem:[#allocation8 + $0x18] sm:$0xf]
        %v1228 = vld [vmem:[#allocation8 + $0x1c] sm:$0xf]
        %v1229 = vld [vmem:[#allocation8 + $0x20] sm:$0xf]
        %v1230 = vld [vmem:[#allocation8 + $0x24] sm:$0xf]
        %v1231 = vld [vmem:[#allocation8 + $0x28] sm:$0xf]
        %v1232 = vld [vmem:[#allocation8 + $0x2c] sm:$0xf]
        %v1233 = vld [vmem:[#allocation8 + $0x30] sm:$0xf]
        %v1234 = vld [vmem:[#allocation8 + $0x34] sm:$0xf]
        %v1235 = vld [vmem:[#allocation8 + $0x38] sm:$0xf]
        %v1236 = vld [vmem:[#allocation8 + $0x3c] sm:$0xf]
        %v1237 = vld [vmem:[#allocation8 + $0x40] sm:$0xf]
        %v1238 = vld [vmem:[#allocation8 + $0x44] sm:$0xf]
        %v1239 = vld [vmem:[#allocation8 + $0x48] sm:$0xf]
        %v1240 = vld [vmem:[#allocation8 + $0x4c] sm:$0xf]
        %v1241 = vld [vmem:[#allocation8 + $0x50] sm:$0xf]
        %v1242 = vld [vmem:[#allocation8 + $0x54] sm:$0xf]
        %v1243 = vld [vmem:[#allocation8 + $0x58] sm:$0xf]
        %v1244 = vld [vmem:[#allocation8 + $0x5c] sm:$0xf]
        %v1245 = vld [vmem:[#allocation8 + $0x60] sm:$0xf]
        %v1246 = vld [vmem:[#allocation8 + $0x64] sm:$0xf]
        %v1247 = vld [vmem:[#allocation8 + $0x68] sm:$0xf]
        %v1248 = vld [vmem:[#allocation8 + $0x6c] sm:$0xf]
        %v1249 = vld [vmem:[#allocation8 + $0x70] sm:$0xf]
        %v1250 = vld [vmem:[#allocation8 + $0x74] sm:$0xf]
        %v1251 = vld [vmem:[#allocation8 + $0x78] sm:$0xf]
        %v1252 = vld [vmem:[#allocation8 + $0x7c] sm:$0xf]
        %v1253 = vld [vmem:[%s4] sm:$0x1]
        %v1255 = vlaneseq
        %v1256 = vshrl.u32 %v1255, 7
        %v1257 = vsub.s32 0, %v1256
        %v1258 = vrot.slane %v1253, %v1257
        %v1264 = vunpack.c.l.b16 %v1217
        %v1265 = vunpack.c.h.b16 %v1217
        %v1266 = vunpack.c.l.b16 %v1218
        %v1267 = vunpack.c.h.b16 %v1218
        %v1268 = vunpack.c.l.b16 %v1219
        %v1269 = vunpack.c.h.b16 %v1219
        %v1270 = vunpack.c.l.b16 %v1220
        %v1271 = vunpack.c.h.b16 %v1220
        %v1272 = vpack.c.b16 %v1266, %v1264
        %v1273 = vpack.c.b16 %v1267, %v1265
        %v1274 = vpack.c.b16 %v1270, %v1268
        %v1275 = vpack.c.b16 %v1271, %v1269
        %v1312 = vunpack.c.l.b16 %v1221
        %v1313 = vunpack.c.l.b16 %v1222
        %v1314 = vunpack.c.l.b16 %v1223
        %v1315 = vunpack.c.l.b16 %v1224
        %v1316 = vunpack.c.l.b16 %v1225
        %v1317 = vunpack.c.l.b16 %v1226
        %v1318 = vunpack.c.l.b16 %v1227
        %v1319 = vunpack.c.l.b16 %v1228
        %v1320 = vunpack.c.l.b16 %v1229
        %v1321 = vunpack.c.l.b16 %v1230
        %v1322 = vunpack.c.l.b16 %v1231
        %v1323 = vunpack.c.l.b16 %v1232
        %v1324 = vunpack.c.l.b16 %v1233
        %v1325 = vunpack.c.l.b16 %v1234
        %v1326 = vunpack.c.l.b16 %v1235
        %v1327 = vunpack.c.l.b16 %v1236
        %v1328 = vunpack.c.l.b16 %v1237
        %v1329 = vunpack.c.l.b16 %v1238
        %v1330 = vunpack.c.l.b16 %v1239
        %v1331 = vunpack.c.l.b16 %v1240
        %v1332 = vunpack.c.l.b16 %v1241
        %v1333 = vunpack.c.l.b16 %v1242
        %v1334 = vunpack.c.l.b16 %v1243
        %v1335 = vunpack.c.l.b16 %v1244
        %v1336 = vunpack.c.l.b16 %v1245
        %v1337 = vunpack.c.l.b16 %v1246
        %v1338 = vunpack.c.l.b16 %v1247
        %v1339 = vunpack.c.l.b16 %v1248
        %v1340 = vunpack.c.l.b16 %v1249
        %v1341 = vunpack.c.l.b16 %v1250
        %v1342 = vunpack.c.l.b16 %v1251
        %v1343 = vunpack.c.l.b16 %v1252
        %v1344 = vpack.c.b16 %v1313, %v1312
        %v1345 = vpack.c.b16 %v1315, %v1314
        %v1346 = vpack.c.b16 %v1317, %v1316
        %v1347 = vpack.c.b16 %v1319, %v1318
        %v1348 = vpack.c.b16 %v1321, %v1320
        %v1349 = vpack.c.b16 %v1323, %v1322
        %v1350 = vpack.c.b16 %v1325, %v1324
        %v1351 = vpack.c.b16 %v1327, %v1326
        %v1352 = vpack.c.b16 %v1329, %v1328
        %v1353 = vpack.c.b16 %v1331, %v1330
        %v1354 = vpack.c.b16 %v1333, %v1332
        %v1355 = vpack.c.b16 %v1335, %v1334
        %v1356 = vpack.c.b16 %v1337, %v1336
        %v1357 = vpack.c.b16 %v1339, %v1338
        %v1358 = vpack.c.b16 %v1341, %v1340
        %v1359 = vpack.c.b16 %v1343, %v1342
        %1376 = vmatprep.subr.bf16.mxu0 0
        %1377 = vmatpush1.bf16.msra.mxu0 %v1351
        %1378 = vmatprep.subr.bf16.mxu0 0
        %1379 = vmatpush1.bf16.msra.mxu0 %v1350
        %1380 = vmatprep.subr.bf16.mxu0 0
        %1381 = vmatpush1.bf16.msra.mxu0 %v1349
        %1382 = vmatprep.subr.bf16.mxu0 0
        %1383 = vmatpush1.bf16.msra.mxu0 %v1348
        %1384 = vmatprep.subr.bf16.mxu0 0
        %1385 = vmatpush1.bf16.msra.mxu0 %v1347
        %1386 = vmatprep.subr.bf16.mxu0 0
        %1387 = vmatpush1.bf16.msra.mxu0 %v1346
        %1388 = vmatprep.subr.bf16.mxu0 0
        %1389 = vmatpush1.bf16.msra.mxu0 %v1345
        %1390 = vmatprep.subr.bf16.mxu0 0
        %1391 = vmatpush1.bf16.msra.mxu0 %v1344
        %1392 = vmatprep.subr.bf16.mxu0 0
        %1393 = vmatpush2.bf16.msra.mxu0 %v1359
        %1394 = vmatprep.subr.bf16.mxu0 0
        %1395 = vmatpush2.bf16.msra.mxu0 %v1358
        %1396 = vmatprep.subr.bf16.mxu0 0
        %1397 = vmatpush2.bf16.msra.mxu0 %v1357
        %1398 = vmatprep.subr.bf16.mxu0 0
        %1399 = vmatpush2.bf16.msra.mxu0 %v1356
        %1400 = vmatprep.subr.bf16.mxu0 0
        %1401 = vmatpush2.bf16.msra.mxu0 %v1355
        %1402 = vmatprep.subr.bf16.mxu0 0
        %1403 = vmatpush2.bf16.msra.mxu0 %v1354
        %1404 = vmatprep.subr.bf16.mxu0 0
        %1405 = vmatpush2.bf16.msra.mxu0 %v1353
        %1406 = vmatprep.subr.bf16.mxu0 0
        %1407 = vmatpush2.bf16.msra.mxu0 %v1352
        %1408 = vmatprep.mubr.bf16.mxu0 %v1273
        %1409 = vmatmul.mubr.bf16.gmra.mxu0 %v1272
        %v1410 = vpop.f32.mrf.mxu0
        %v1411 = vadd.f32 %v1258, %v1410
        %v1412 = vpop.f32.mrf.mxu0
        %v1413 = vpop.f32.mrf.mxu0
        %v1414 = vadd.f32 %v1258, %v1413
        %v1415 = vpop.f32.mrf.mxu0
        %1416 = vmatprep.mubr.bf16.mxu0 %v1275
        %1417 = vmatmul.mubr.bf16.gmra.mxu0 %v1274
        %v1418 = vpop.f32.mrf.mxu0
        %v1419 = vadd.f32 %v1258, %v1418
        %v1420 = vpop.f32.mrf.mxu0
        %v1421 = vpop.f32.mrf.mxu0
        %v1422 = vadd.f32 %v1258, %v1421
        %v1423 = vpop.f32.mrf.mxu0
        %1424 = vdwg.mxu0
        %1425 = vst [vmem:[%s272] sm:$0xff] %v1411
        %1426 = vst [vmem:[%s272 + $0x8] sm:$0xff] %v1414
        %1427 = vst [vmem:[%s272 + $0x10] sm:$0xff] %v1419
        %1428 = vst [vmem:[%s272 + $0x18] sm:$0xff] %v1422
        %s1429 = sand.u32 %s141, 1
        %s1430 = scalar_lea.sflag [#allocation5], %s1429
        %s1431 = sand.u32 %s141, 1
        %s1432 = smul.addr %s1431, 32
        %s1433 = scalar_lea.vmem [#allocation9], %s1432
        // Predicated region
        $region53: #{tpu_custom_call.1} parent=39 // pred_check
          %p1434 = pneg %p151
        $region54: #{tpu_custom_call.1} parent=39 // pred_check_branch
          %1436 = sbr.rel (%p1434) target = $region56
        $region55: #{tpu_custom_call.1} parent=39 // pred_region
          %s1437 = smul.u32 4, %s23
          %s1439 = ssub.s32 512, 512
          %1440 = vsyncadd %s1430, %s1439
          %s1441 = smul.addr %s1437, 128
          %s1442 = scalar_lea.hbm %s5, %s1441
          %s1443 = sshll.u32 %s1433, 4
          %s1444 = int_to_ptr.vmem [resolvable:$true] %s1443
          %1449 = dma.vmem_to_hbm [thread:$0]  %s1444, 512, %s1442, %s1430, 128, 128, 8
        $region56: #{tpu_custom_call.1} parent=39 // pred_fallthru
          _
      $region40: #{tpu_custom_call.1} parent=5 // pred_fallthru
        _
      %p1450 = scmp.le.s32.totalorder 2, %s18
      // Predicated region
      $region57: #{tpu_custom_call.1} parent=5 // pred_check
        %p1451 = pneg %p1450
      $region58: #{tpu_custom_call.1} parent=5 // pred_check_branch
        %1453 = sbr.rel (%p1451) target = $region60
      $region59: #{tpu_custom_call.1} parent=5 // pred_region
        %s1454 = ssub.s32 %s18, 2
        // Predicated region
        $region61: #{tpu_custom_call.1} parent=59 // pred_check
          %p1455 = pneg %p157
        $region62: #{tpu_custom_call.1} parent=59 // pred_check_branch
          %1457 = sbr.rel (%p1455) target = $region64
        $region63: #{tpu_custom_call.1} parent=59 // pred_region
          %s1458 = sand.u32 %s142, 1
          %s1459 = scalar_lea.sflag [#allocation5], %s1458
          %s1460 = sand.u32 %s142, 1
          %s1461 = smul.addr %s1460, 32
          %s1462 = scalar_lea.vmem [#allocation9], %s1461
          %1463 = dma.done %s1459, 512
        $region64: #{tpu_custom_call.1} parent=59 // pred_fallthru
          _
      $region60: #{tpu_custom_call.1} parent=5 // pred_fallthru
        _
    $region6: #{tpu_custom_call.1} parent=1 // loop_footer
      %s22 = sadd.s32 1, %s18
    $region7: #{tpu_custom_call.1} parent=1 // loop_footer_branch
      %17 = sbr.rel target = $region3
    $region8: #{tpu_custom_call.1} parent=1 // loop_exit
      _
    %1464 = vsyncpa [#allocation4], 1
    %s1465 = scalar_lea.sflag [#allocation4], 1
    %1466 = vsyncpa %s1465, 1
    %1467 = vsyncpa [#allocation7], 1
    %1468 = vsyncpa [#allocation5], 1
    %s1469 = scalar_lea.sflag [#allocation5], 1
    %1470 = vsyncpa %s1469, 1

</llo_original>
